<compile_context>
chip_gen: v7x
topology: tpu7x:2x2x1
jax: 0.10.0
libtpu: 0.0.40
codegen_flags: <defaults>
</compile_context>

<pallas_src>
import functools

import jax
import jax.numpy as jnp
from jax.experimental import pallas as pl
from jax.experimental.pallas import tpu as pltpu


def _round_up(n, m):
    return ((n + m - 1) // m) * m


def _cdiv(a, b):
    return -(-a // b)


def _bimodal_kernel(x_ref, w1_ref, b1_ref, w2_ref, b2_ref, o_ref, *, res):
    # hidden = relu(x @ W1 + b1): bf16 MXU operands, f32 accumulate,
    # f32 VPU epilogue (v5e has no bf16 VPU/EUP).
    x = x_ref[...].astype(jnp.bfloat16)
    w1 = w1_ref[...].astype(jnp.bfloat16)
    h = jnp.dot(x, w1, preferred_element_type=jnp.float32)
    h = jnp.maximum(h + b1_ref[...], 0.0)

    # logits = h @ W2 + b2
    w2 = w2_ref[...].astype(jnp.bfloat16)
    logits = jnp.dot(h.astype(jnp.bfloat16), w2,
                     preferred_element_type=jnp.float32)
    logits = logits + b2_ref[...]

    if res:
        out = jnp.tanh(logits)
    else:
        # sigmoid(z) == 0.5 * tanh(z / 2) + 0.5  -> single EUP transcendental.
        out = 0.5 * jnp.tanh(0.5 * logits) + 0.5
    o_ref[...] = out.astype(o_ref.dtype)


def _choose_batch_tile(B, block_b):
    """Pick TB (multiple of 8) minimizing padding; >=2 grid steps when B > 8."""
    B8 = _round_up(max(B, 1), 8)
    if B8 <= 8:
        return 8, 8
    n_tiles = max(_cdiv(B8, block_b), 2)        # >=2 steps -> megacore split on v7x
    TB = _round_up(_cdiv(B8, n_tiles), 8)
    Bp = _round_up(B8, TB)
    return TB, Bp


def bimodal_forward(x, w1, b1, w2, b2, *, res=False, block_b=1024):
    """x: [B, 2*input_dim] f32, w1: [2*input_dim, H] f32, b1: [1, H] f32,
    w2: [H, O] f32, b2: [1, O] f32  ->  [B, O] float32."""
    B, K = x.shape
    H = w1.shape[1]
    O = w2.shape[1]

    TB, Bp = _choose_batch_tile(B, block_b)

    # Only the ragged batch dimension is padded (zero rows are sliced off).
    xp = x if Bp == B else jnp.pad(x, ((0, Bp - B), (0, 0)))

    # VMEM guard: double-buffered x/out tiles + resident (pipeline-buffered)
    # weights/biases, with generous headroom for compiler scratch.  Keeps the
    # tiling portable to v7x's 64 MiB physical / 32 MiB scoped-default VMEM.
    f32 = 4
    vmem_est = (2 * TB * K + 2 * TB * O                 # x / out double buffers
                + 2 * (K * H + H + H * O + O)) * f32    # weights + biases
    vmem_limit = min(2 * vmem_est + (8 << 20), 128 << 20)

    kernel = functools.partial(_bimodal_kernel, res=res)

    out = pl.pallas_call(
        kernel,
        out_shape=jax.ShapeDtypeStruct((Bp, O), jnp.float32),
        grid=(Bp // TB,),
        in_specs=[
            pl.BlockSpec((TB, K), lambda i: (i, 0)),   # x: tiled over batch, full K
            pl.BlockSpec((K, H), lambda i: (0, 0)),    # w1: VMEM-resident
            pl.BlockSpec((1, H), lambda i: (0, 0)),    # b1: resident
            pl.BlockSpec((H, O), lambda i: (0, 0)),    # w2: resident
            pl.BlockSpec((1, O), lambda i: (0, 0)),    # b2: resident
        ],
        out_specs=pl.BlockSpec((TB, O), lambda i: (i, 0)),  # unpadded (masked vst)
        compiler_params=pltpu.CompilerParams(
            dimension_semantics=("parallel",),
            vmem_limit_bytes=vmem_limit),
    )(xp, w1, b1, w2, b2)

    return out if Bp == B else out[:B]


def init_params(key, input_dim, hidden_dim, output_dim):
    """PyTorch-Linear-style init (uniform +-1/sqrt(fan_in)); weights stored
    pre-transposed to [in, out]."""
    in_features = input_dim * 2
    k1, k2, k3, k4 = jax.random.split(key, 4)

    bound1 = 1.0 / jnp.sqrt(in_features)
    w1 = jax.random.uniform(k1, (in_features, hidden_dim), jnp.float32,
                            minval=-bound1, maxval=bound1)
    b1 = jax.random.uniform(k2, (1, hidden_dim), jnp.float32,
                            minval=-bound1, maxval=bound1)

    bound2 = 1.0 / jnp.sqrt(hidden_dim)
    w2 = jax.random.uniform(k3, (hidden_dim, output_dim), jnp.float32,
                            minval=-bound2, maxval=bound2)
    b2 = jax.random.uniform(k4, (1, output_dim), jnp.float32,
                            minval=-bound2, maxval=bound2)
    return w1, b1, w2, b2


def reference_forward(x, w1, b1, w2, b2, *, res=False):
    h = jnp.maximum(x @ w1 + b1, 0.0)
    logits = h @ w2 + b2
    return jnp.tanh(logits) if res else jax.nn.sigmoid(logits)


if __name__ == "__main__":
    # Small shapes consistent with the module: input_dim=16 -> 32 input features.
    batch, input_dim, hidden_dim, output_dim = 8, 16, 32, 8

    key = jax.random.PRNGKey(0)
    kx, kp = jax.random.split(key)
    x = jax.random.normal(kx, (batch, input_dim * 2), dtype=jnp.float32)
    w1, b1, w2, b2 = init_params(kp, input_dim, hidden_dim, output_dim)

    # bf16 MXU operands -> loosen the tolerance vs. the f32 reference.
    tol = dict(atol=2e-2, rtol=2e-2)

    out = jax.block_until_ready(bimodal_forward(x, w1, b1, w2, b2, res=False))
    ref = reference_forward(x, w1, b1, w2, b2, res=False)
    assert out.shape == (batch, output_dim)
    assert jnp.allclose(out, ref, **tol)

    # res=True (tanh) path.
    out_res = jax.block_until_ready(bimodal_forward(x, w1, b1, w2, b2, res=True))
    ref_res = reference_forward(x, w1, b1, w2, b2, res=True)
    assert jnp.allclose(out_res, ref_res, **tol)

    # Ragged, multi-step batch: exercises the >=2-step grid, minimal-pad tile
    # selection, and the padded final tile row-slice.
    big_b = 1000
    xb = jax.random.normal(jax.random.PRNGKey(1), (big_b, input_dim * 2),
                           dtype=jnp.float32)
    out_big = jax.block_until_ready(
        bimodal_forward(xb, w1, b1, w2, b2, res=False))
    ref_big = reference_forward(xb, w1, b1, w2, b2, res=False)
    assert out_big.shape == (big_b, output_dim)
    assert jnp.allclose(out_big, ref_big, **tol)

    print("KERNEL_OK")
</pallas_src>

<mosaic_0001>
module attributes {stable_mosaic.version = 11 : i64} {
  func.func @_bimodal_kernel(%arg0: i32, %arg1: memref<8x32xf32, #tpu.memory_space<vmem>>, %arg2: memref<32x32xf32, #tpu.memory_space<vmem>>, %arg3: memref<1x32xf32, #tpu.memory_space<vmem>>, %arg4: memref<32x8xf32, #tpu.memory_space<vmem>>, %arg5: memref<1x8xf32, #tpu.memory_space<vmem>>, %arg6: memref<8x8xf32, #tpu.memory_space<vmem>>) attributes {dimension_semantics = [#tpu.dimension_semantics<parallel>], iteration_bounds = array<i64: 1>, scalar_prefetch = 0 : i64, scratch_operands = 0 : i64, tpu.core_type = #tpu.core_type<tc>, window_params = [{transform_indices = @transform_0, window_bounds = array<i64: 8, 32>}, {pipeline_mode = #tpu.pipeline_mode<synchronous>, transform_indices = @transform_1, window_bounds = array<i64: 32, 32>}, {pipeline_mode = #tpu.pipeline_mode<synchronous>, transform_indices = @transform_2, window_bounds = array<i64: 1, 32>}, {pipeline_mode = #tpu.pipeline_mode<synchronous>, transform_indices = @transform_3, window_bounds = array<i64: 32, 8>}, {pipeline_mode = #tpu.pipeline_mode<synchronous>, transform_indices = @transform_4, window_bounds = array<i64: 1, 8>}, {transform_indices = @transform_5, window_bounds = array<i64: 8, 8>}]} {
    %c0 = arith.constant 0 : index
    %c0_0 = arith.constant 0 : index
    %0 = vector.load %arg1[%c0, %c0_0] : memref<8x32xf32, #tpu.memory_space<vmem>>, vector<8x32xf32>
    %1 = arith.truncf %0 : vector<8x32xf32> to vector<8x32xbf16>
    %c0_1 = arith.constant 0 : index
    %c0_2 = arith.constant 0 : index
    %2 = vector.load %arg2[%c0_1, %c0_2] : memref<32x32xf32, #tpu.memory_space<vmem>>, vector<32x32xf32>
    %3 = arith.truncf %2 : vector<32x32xf32> to vector<32x32xbf16>
    %cst = arith.constant dense<0.000000e+00> : vector<8x32xf32>
    %4 = tpu.matmul %1, %3, %cst {dimension_numbers = #tpu.dot_dimension_numbers<[1], [0], [0], [1], [0, 0, 1, 1], [], []>} : vector<8x32xbf16>, vector<32x32xbf16>, vector<8x32xf32> -> vector<8x32xf32>
    %c0_3 = arith.constant 0 : index
    %c0_4 = arith.constant 0 : index
    %5 = vector.load %arg3[%c0_3, %c0_4] : memref<1x32xf32, #tpu.memory_space<vmem>>, vector<1x32xf32>
    %6 = vector.broadcast %5 : vector<1x32xf32> to vector<8x32xf32>
    %7 = arith.addf %4, %6 : vector<8x32xf32>
    %cst_5 = arith.constant 0.000000e+00 : f32
    %8 = vector.broadcast %cst_5 : f32 to vector<8x32xf32>
    %9 = arith.maximumf %7, %8 : vector<8x32xf32>
    %c0_6 = arith.constant 0 : index
    %c0_7 = arith.constant 0 : index
    %10 = vector.load %arg4[%c0_6, %c0_7] : memref<32x8xf32, #tpu.memory_space<vmem>>, vector<32x8xf32>
    %11 = arith.truncf %10 : vector<32x8xf32> to vector<32x8xbf16>
    %12 = arith.truncf %9 : vector<8x32xf32> to vector<8x32xbf16>
    %cst_8 = arith.constant dense<0.000000e+00> : vector<8x8xf32>
    %13 = tpu.matmul %12, %11, %cst_8 {dimension_numbers = #tpu.dot_dimension_numbers<[1], [0], [0], [1], [0, 0, 1, 1], [], []>} : vector<8x32xbf16>, vector<32x8xbf16>, vector<8x8xf32> -> vector<8x8xf32>
    %c0_9 = arith.constant 0 : index
    %c0_10 = arith.constant 0 : index
    %14 = vector.load %arg5[%c0_9, %c0_10] : memref<1x8xf32, #tpu.memory_space<vmem>>, vector<1x8xf32>
    %15 = vector.broadcast %14 : vector<1x8xf32> to vector<8x8xf32>
    %16 = arith.addf %13, %15 : vector<8x8xf32>
    %cst_11 = arith.constant 5.000000e-01 : f32
    %17 = vector.broadcast %cst_11 : f32 to vector<8x8xf32>
    %18 = arith.mulf %17, %16 : vector<8x8xf32>
    %19 = math.tanh %18 : vector<8x8xf32>
    %cst_12 = arith.constant 5.000000e-01 : f32
    %20 = vector.broadcast %cst_12 : f32 to vector<8x8xf32>
    %21 = arith.mulf %20, %19 : vector<8x8xf32>
    %cst_13 = arith.constant 5.000000e-01 : f32
    %22 = vector.broadcast %cst_13 : f32 to vector<8x8xf32>
    %23 = arith.addf %21, %22 : vector<8x8xf32>
    %c0_14 = arith.constant 0 : index
    %c0_15 = arith.constant 0 : index
    %24 = vector.load %arg6[%c0_14, %c0_15] : memref<8x8xf32, #tpu.memory_space<vmem>>, vector<8x8xf32>
    tpu.vector_store %arg6[%c0_14, %c0_15], %23 {strides = array<i32>} : memref<8x8xf32, #tpu.memory_space<vmem>>, vector<8x8xf32>,
    return
  }
  func.func @transform_0(%arg0: i32) -> (i32, i32) {
    %c0_i32 = arith.constant 0 : i32
    %c0_i32_0 = arith.constant 0 : i32
    return %arg0, %c0_i32 : i32, i32
  }
  func.func @transform_1(%arg0: i32) -> (i32, i32) {
    %c0_i32 = arith.constant 0 : i32
    %c0_i32_0 = arith.constant 0 : i32
    %c0_i32_1 = arith.constant 0 : i32
    return %c0_i32, %c0_i32_0 : i32, i32
  }
  func.func @transform_2(%arg0: i32) -> (i32, i32) {
    %c0_i32 = arith.constant 0 : i32
    %c0_i32_0 = arith.constant 0 : i32
    %c0_i32_1 = arith.constant 0 : i32
    return %c0_i32, %c0_i32_0 : i32, i32
  }
  func.func @transform_3(%arg0: i32) -> (i32, i32) {
    %c0_i32 = arith.constant 0 : i32
    %c0_i32_0 = arith.constant 0 : i32
    %c0_i32_1 = arith.constant 0 : i32
    return %c0_i32, %c0_i32_0 : i32, i32
  }
  func.func @transform_4(%arg0: i32) -> (i32, i32) {
    %c0_i32 = arith.constant 0 : i32
    %c0_i32_0 = arith.constant 0 : i32
    %c0_i32_1 = arith.constant 0 : i32
    return %c0_i32, %c0_i32_0 : i32, i32
  }
  func.func @transform_5(%arg0: i32) -> (i32, i32) {
    %c0_i32 = arith.constant 0 : i32
    %c0_i32_0 = arith.constant 0 : i32
    return %arg0, %c0_i32 : i32, i32
  }
}

</mosaic_0001>

<llo_original>
// kernel: tpu_custom_call.1
$region0: #{tpu_custom_call.1}
  #allocation0 [shape = 'u32[]', space=smem, size = 0x4, offset = 0x4, fixed_abs, tag = 'smem constant byte address 0x4 - core index']
  #allocation1 [shape = 'u32[144,128]{1,0:T(1,128)}', space=vmem, size = 0x12000, scoped, tag = 'internal scratch']
  %s0 = inlined_call_operand.vmem [shape: f32[8,32], index: 0, kind: input, shape index: {}]
  %s1 = inlined_call_operand.vmem [shape: f32[32,32], index: 1, kind: input, shape index: {}]
  %s2 = inlined_call_operand.vmem [shape: f32[1,32], index: 2, kind: input, shape index: {}]
  %s3 = inlined_call_operand.vmem [shape: f32[32,8], index: 3, kind: input, shape index: {}]
  %s4 = inlined_call_operand.vmem [shape: f32[1,8], index: 4, kind: input, shape index: {}]
  %s5 = inlined_call_operand.hbm [shape: f32[8,8], index: 5, kind: output, shape index: {}]
  %s6 = sld [smem:[#allocation0]]
  $region30: #{tpu_custom_call.1} parent=0
    _
  %s8 = ssub.s32 1, %s6
  %s9 = scalar_select 0, %s8, %s6
  $region1: #{tpu_custom_call.1} parent=0
    #allocation2 [shape = 'u8[4096]{0}', space=vmem, size = 0x1000, scoped, tag = 'output window, operand 0, single buffered']
    #allocation3 [shape = 's32[1]{0}', space=sflag, size = 0x4, scoped, tag = 'scoped memory for tpu_custom_call.1']
    %10 = vsyncpa [#allocation3], 0
    // Predicated region
    $region2: #{tpu_custom_call.1} parent=1 // pred_check
      _
    $region3: #{tpu_custom_call.1} parent=1 // pred_check_branch
      %12 = sbr.rel (0) target = $region5
    $region4: #{tpu_custom_call.1} parent=1 // pred_region
      _
    $region5: #{tpu_custom_call.1} parent=1 // pred_fallthru
      _
    // Predicated region
    $region6: #{tpu_custom_call.1} parent=1 // pred_check
      _
    $region7: #{tpu_custom_call.1} parent=1 // pred_check_branch
      %14 = sbr.rel (0) target = $region9
    $region8: #{tpu_custom_call.1} parent=1 // pred_region
      _
    $region9: #{tpu_custom_call.1} parent=1 // pred_fallthru
      _
    // Predicated region
    $region10: #{tpu_custom_call.1} parent=1 // pred_check
      _
    $region11: #{tpu_custom_call.1} parent=1 // pred_check_branch
      %16 = sbr.rel (0) target = $region13
    $region12: #{tpu_custom_call.1} parent=1 // pred_region
      _
    $region13: #{tpu_custom_call.1} parent=1 // pred_fallthru
      _
    // Predicated region
    $region14: #{tpu_custom_call.1} parent=1 // pred_check
      _
    $region15: #{tpu_custom_call.1} parent=1 // pred_check_branch
      %18 = sbr.rel (0) target = $region17
    $region16: #{tpu_custom_call.1} parent=1 // pred_region
      _
    $region17: #{tpu_custom_call.1} parent=1 // pred_fallthru
      _
    // Predicated region
    $region18: #{tpu_custom_call.1} parent=1 // pred_check
      _
    $region19: #{tpu_custom_call.1} parent=1 // pred_check_branch
      %20 = sbr.rel (0) target = $region21
    $region20: #{tpu_custom_call.1} parent=1 // pred_region
      _
    $region21: #{tpu_custom_call.1} parent=1 // pred_fallthru
      _
    %v22 = vld [vmem:[%s0] sm:$0xff]
    %v23 = vpack.c.bf16 %v22, %v22
    %v24 = vld [vmem:[%s1] sm:$0xff]
    %v25 = vld [vmem:[%s1 + $0x8] sm:$0xff]
    %v26 = vld [vmem:[%s1 + $0x10] sm:$0xff]
    %v27 = vld [vmem:[%s1 + $0x18] sm:$0xff]
    %v28 = vpack.c.bf16 %v25, %v24
    %v29 = vpack.c.bf16 %v27, %v26
    %v30 = vld [vmem:[%s2] sm:$0x1]
    %v32 = vlaneseq
    %v33 = vshrl.u32 %v32, 7
    %v34 = vsub.s32 0, %v33
    %v35 = vrot.slane %v30, %v34
    %vm37 = vcmask 261120
    %v39 = vsel %vm37, %v23, 0
    %41 = vmatprep.subr.bf16.mxu0 0
    %42 = vmatpush1.bf16.msra.mxu0 %v28
    %43 = vmatprep.subr.bf16.mxu0 0
    %44 = vmatpush1.bf16.msra.mxu0 %v29
    %45 = vmatprep.subr.bf16.mxu0 0
    %46 = vmatpush1.bf16.msra.mxu0 0
    %47 = vmatprep.subr.bf16.mxu0 0
    %48 = vmatpush1.bf16.msra.mxu0 0
    %49 = vmatprep.subr.bf16.mxu0 0
    %50 = vmatpush1.bf16.msra.mxu0 0
    %51 = vmatprep.subr.bf16.mxu0 0
    %52 = vmatpush1.bf16.msra.mxu0 0
    %53 = vmatprep.subr.bf16.mxu0 0
    %54 = vmatpush1.bf16.msra.mxu0 0
    %55 = vmatprep.subr.bf16.mxu0 0
    %56 = vmatpush1.bf16.msra.mxu0 0
    %57 = vmatprep.subr.bf16.mxu0 0
    %58 = vmatpush1.bf16.msra.mxu0 0
    %59 = vmatprep.subr.bf16.mxu0 0
    %60 = vmatpush1.bf16.msra.mxu0 0
    %61 = vmatprep.subr.bf16.mxu0 0
    %62 = vmatpush1.bf16.msra.mxu0 0
    %63 = vmatprep.subr.bf16.mxu0 0
    %64 = vmatpush1.bf16.msra.mxu0 0
    %65 = vmatprep.subr.bf16.mxu0 0
    %66 = vmatpush1.bf16.msra.mxu0 0
    %67 = vmatprep.subr.bf16.mxu0 0
    %68 = vmatpush1.bf16.msra.mxu0 0
    %69 = vmatprep.subr.bf16.mxu0 0
    %70 = vmatpush1.bf16.msra.mxu0 0
    %71 = vmatprep.subr.bf16.mxu0 0
    %72 = vmatpush1.bf16.msra.mxu0 0
    %73 = vmatprep.mubr.bf16.mxu0 0
    %74 = vmatmul.mubr.bf16.gmra.mrb[0].mxu0 %v39
    %v75 = vpop.f32.mrb[0].mxu0
    %v76 = vadd.f32 %v35, %v75
    %v77 = vpop.f32.mrb[0].mxu0
    %v78 = vpop.f32.mrb[0].mxu0
    %v79 = vpop.f32.mrb[0].mxu0
    %80 = vdwg.mxu0
    %v81 = vmax.f32 %v76, 0.0
    %v82 = vld [vmem:[%s3] sm:$0xff]
    %v83 = vld [vmem:[%s3 + $0x8] sm:$0xff]
    %v84 = vld [vmem:[%s3 + $0x10] sm:$0xff]
    %v85 = vld [vmem:[%s3 + $0x18] sm:$0xff]
    %v86 = vpack.c.bf16 %v83, %v82
    %v87 = vpack.c.bf16 %v85, %v84
    %v88 = vpack.c.bf16 %v81, %v81
    %v89 = vld [vmem:[%s4] sm:$0x1]
    %v91 = vlaneseq
    %v92 = vshrl.u32 %v91, 7
    %v93 = vsub.s32 0, %v92
    %v94 = vrot.slane %v89, %v93
    %v97 = vsel %vm37, %v88, 0
    %99 = vmatprep.subr.bf16.mxu0 0
    %100 = vmatpush1.bf16.msra.mxu0 %v86
    %101 = vmatprep.subr.bf16.mxu0 0
    %102 = vmatpush1.bf16.msra.mxu0 %v87
    %103 = vmatprep.subr.bf16.mxu0 0
    %104 = vmatpush1.bf16.msra.mxu0 0
    %105 = vmatprep.subr.bf16.mxu0 0
    %106 = vmatpush1.bf16.msra.mxu0 0
    %107 = vmatprep.subr.bf16.mxu0 0
    %108 = vmatpush1.bf16.msra.mxu0 0
    %109 = vmatprep.subr.bf16.mxu0 0
    %110 = vmatpush1.bf16.msra.mxu0 0
    %111 = vmatprep.subr.bf16.mxu0 0
    %112 = vmatpush1.bf16.msra.mxu0 0
    %113 = vmatprep.subr.bf16.mxu0 0
    %114 = vmatpush1.bf16.msra.mxu0 0
    %115 = vmatprep.subr.bf16.mxu0 0
    %116 = vmatpush1.bf16.msra.mxu0 0
    %117 = vmatprep.subr.bf16.mxu0 0
    %118 = vmatpush1.bf16.msra.mxu0 0
    %119 = vmatprep.subr.bf16.mxu0 0
    %120 = vmatpush1.bf16.msra.mxu0 0
    %121 = vmatprep.subr.bf16.mxu0 0
    %122 = vmatpush1.bf16.msra.mxu0 0
    %123 = vmatprep.subr.bf16.mxu0 0
    %124 = vmatpush1.bf16.msra.mxu0 0
    %125 = vmatprep.subr.bf16.mxu0 0
    %126 = vmatpush1.bf16.msra.mxu0 0
    %127 = vmatprep.subr.bf16.mxu0 0
    %128 = vmatpush1.bf16.msra.mxu0 0
    %129 = vmatprep.subr.bf16.mxu0 0
    %130 = vmatpush1.bf16.msra.mxu0 0
    %131 = vmatprep.mubr.bf16.mxu0 0
    %132 = vmatmul.mubr.bf16.gmra.mrb[0].mxu0 %v97
    %v133 = vpop.f32.mrb[0].mxu0
    %v134 = vadd.f32 %v94, %v133
    %v135 = vpop.f32.mrb[0].mxu0
    %v136 = vpop.f32.mrb[0].mxu0
    %v137 = vpop.f32.mrb[0].mxu0
    %138 = vdwg.mxu0
    %v139 = vmul.f32 %v134, 0.5
    %v140 = vtanh.pop %v139
    %v141 = vmul.f32 %v140, 0.5
    %v142 = vadd.f32 %v141, 0.5
    %vm143 = vcmask 64512
    %144 = vst.msk [vmem:[#allocation2] sm:$0xff] %vm143, %v142
    // Predicated region
    $region22: #{tpu_custom_call.1} parent=1 // pred_check
      _
    $region23: #{tpu_custom_call.1} parent=1 // pred_check_branch
      %146 = sbr.rel (0) target = $region25
    $region24: #{tpu_custom_call.1} parent=1 // pred_region
      %s148 = ssub.s32 128, 128
      %149 = vsyncadd [#allocation3], %s148
      %s151 = sshll.u32 [#allocation2], 4
      %s152 = int_to_ptr.vmem [resolvable:$true] %s151
      %154 = dma.vmem_to_hbm [thread:$0]  %s152, 128, %s5, [#allocation3]
    $region25: #{tpu_custom_call.1} parent=1 // pred_fallthru
      _
    // Predicated region
    $region26: #{tpu_custom_call.1} parent=1 // pred_check
      _
    $region27: #{tpu_custom_call.1} parent=1 // pred_check_branch
      %156 = sbr.rel (0) target = $region29
    $region28: #{tpu_custom_call.1} parent=1 // pred_region
      %157 = dma.done [#allocation3], 128
    $region29: #{tpu_custom_call.1} parent=1 // pred_fallthru
      _
    %158 = vsyncpa [#allocation3], 1

</llo_original>
